<compile_context>
chip_gen: v7x
topology: tpu7x:2x2x1
jax: 0.10.0
libtpu: 0.0.40
codegen_flags: <defaults>
</compile_context>

<pallas_src>
import jax
import jax.numpy as jnp
from jax.experimental import pallas as pl
from jax.experimental.pallas import tpu as pltpu


_LANE_TILE_CAP = 32768  # max column-tile width (lanes); bounds the unrolled lane fold.


def _round_up(a, m):
    return -(-a // m) * m


def _pick_tile(total, cap, quantum):
    """Pick a tile size (multiple of `quantum`, <= cap) for an axis of padded
    length `total` (itself a multiple of `quantum`).  Prefers exact divisors
    (zero extra padding); otherwise falls back to a near-even split with a
    little padding.  Returns (tile, padded_total)."""
    cap = max(quantum, min(cap, total))
    cap = (cap // quantum) * quantum
    best = quantum
    t = cap
    while t >= quantum:
        if total % t == 0:
            best = t
            break
        t -= quantum
    if best * 2 >= cap:
        return best, total
    # All exact divisors are tiny; accept slight padding for near-cap tiles.
    n = -(-total // cap)
    tile = _round_up(-(-total // n), quantum)
    return tile, n * tile


def _demix_partial_kernel(x_ref, d0_ref, d1_ref, out_ref):
    # x_ref : (2, tb, tc)   d0_ref/d1_ref : (tb, tc)   out_ref : (8, 128)
    tb, tc = d0_ref.shape

    def half_contrib(d_ref, x_group):
        d = d_ref[...]
        xg = x_ref[x_group]
        if d.dtype != jnp.float32:
            d = d.astype(jnp.float32)
        if xg.dtype != jnp.float32:
            xg = xg.astype(jnp.float32)
        diff = d - xg
        sq = diff * diff
        # Fold row groups of 8: splitting the sublane-major dim at tile
        # granularity is layout-preserving, so this is pure VPU adds.
        return jnp.sum(sq.reshape(tb // 8, 8, tc), axis=0)        # (8, tc)

    part = half_contrib(d0_ref, 0) + half_contrib(d1_ref, 1)       # (8, tc)

    # Fold lane tiles with tile-aligned static slices (no relayout, no XLU),
    # a few independent accumulators keep the dependency chain short.
    nlt = tc // 128
    n_acc = min(4, nlt)
    accs = [part[:, g * 128:(g + 1) * 128] for g in range(n_acc)]
    for g in range(n_acc, nlt):
        a = g % n_acc
        accs[a] = accs[a] + part[:, g * 128:(g + 1) * 128]
    acc = accs[0]
    for extra in accs[1:]:
        acc = acc + extra

    out_ref[...] = acc                                              # full (8,128) store


def demix_loss(x, demix_output, *,
               max_block_bytes=8 * 1024 * 1024,
               vmem_limit_bytes=48 * 1024 * 1024):
    """Pallas equivalent of DemixLoss.forward(x, demix_output)."""
    B, C, H, W = x.shape
    assert B % 2 == 0, "DemixLoss requires an even batch size"
    half = B // 2
    chw = C * H * W
    assert demix_output.shape == (half, 2 * C, H, W), demix_output.shape

    in_itemsize = max(jnp.dtype(x.dtype).itemsize,
                      jnp.dtype(demix_output.dtype).itemsize)

    # ---- Block budget: 2 pipeline buffers of (x: 2E + d0: E + d1: E) input
    # elements plus ~4 f32-equivalent temporaries per element, with slack. ----
    slack = 4 * 1024 * 1024
    max_elems = max(8 * 128,
                    (vmem_limit_bytes - slack) // (8 * in_itemsize + 16))
    max_elems = min(max_elems, max(8 * 128, max_block_bytes // (2 * in_itemsize)))

    chw_p0 = _round_up(chw, 128)
    half_p0 = _round_up(half, 8)

    # Column (lane) tile.
    tc_cap = min(_LANE_TILE_CAP, max(128, (max_elems // 8) // 128 * 128))
    tc, chw_p = _pick_tile(chw_p0, tc_cap, 128)
    nc = chw_p // tc

    # Row (sublane) tile.
    tb_cap = max(8, (max_elems // tc) // 8 * 8)
    if nc == 1 and half_p0 >= 16:
        # Guarantee >=2 grid steps so the "parallel" axis feeds both v7x TCs.
        tb_cap = min(tb_cap, (half_p0 // 2) // 8 * 8)
    tb, half_p = _pick_tile(half_p0, tb_cap, 8)
    nr = half_p // tb

    # ---- Free reshapes (+ zero padding only when shapes are misaligned). ----
    x_r = x.reshape(2, half, chw)
    d_r = demix_output.reshape(half, 2, chw)
    if half_p != half or chw_p != chw:
        x_r = jnp.pad(x_r, ((0, 0), (0, half_p - half), (0, chw_p - chw)))
        d_r = jnp.pad(d_r, ((0, half_p - half), (0, 0), (0, chw_p - chw)))
    d_r = d_r.reshape(half_p, 2 * chw_p)

    total = half * 2 * chw
    out_bytes = nr * 8 * nc * 128 * 4
    cost = pl.CostEstimate(
        flops=3 * total,
        transcendentals=0,
        bytes_accessed=2 * total * in_itemsize + out_bytes,
    )

    partials = pl.pallas_call(
        _demix_partial_kernel,
        out_shape=jax.ShapeDtypeStruct((nr * 8, nc * 128), jnp.float32),
        grid=(nr, nc),
        in_specs=[
            # x block: both batch halves for tb paired rows, tc columns.
            pl.BlockSpec((2, tb, tc), lambda i, j: (0, i, j)),
            # demix, first channel half  (columns [0, chw_p)).
            pl.BlockSpec((tb, tc), lambda i, j: (i, j)),
            # demix, second channel half (columns [chw_p, 2*chw_p)).
            pl.BlockSpec((tb, tc), lambda i, j: (i, j + nc)),
        ],
        # Each grid step writes its own aligned (8,128) partial tile -> no
        # cross-step accumulation, both axes shard across TensorCores.
        out_specs=pl.BlockSpec((8, 128), lambda i, j: (i, j)),
        compiler_params=pltpu.CompilerParams(
            dimension_semantics=("parallel", "parallel"),
            vmem_limit_bytes=vmem_limit_bytes,
        ),
        cost_estimate=cost,
    )(x_r, d_r, d_r)

    return jnp.sum(partials) * (1.0 / float(total))


def demix_loss_ref(x, demix_output):
    """Pure-JAX reference (mirrors the PyTorch forward)."""
    B = x.shape[0]
    paired = jnp.concatenate([x[: B // 2], x[B // 2:]], axis=1)
    return jnp.mean((demix_output - paired) ** 2)


if __name__ == "__main__":
    key = jax.random.PRNGKey(0)
    k1, k2 = jax.random.split(key)

    B, C, H, W = 4, 4, 16, 16
    x = jax.random.normal(k1, (B, C, H, W), dtype=jnp.float32)
    demix_output = jax.random.normal(k2, (B // 2, 2 * C, H, W), dtype=jnp.float32)

    loss = demix_loss(x, demix_output)
    jax.block_until_ready(loss)

    ref = demix_loss_ref(x, demix_output)
    jax.block_until_ready(ref)

    assert jnp.allclose(loss, ref, rtol=1e-5, atol=1e-6), (loss, ref)
    print("KERNEL_OK")
</pallas_src>

<mosaic_0001>
module attributes {stable_mosaic.version = 11 : i64} {
  func.func @_demix_partial_kernel(%arg0: i32, %arg1: i32, %arg2: memref<2x8x1024xf32, #tpu.memory_space<vmem>>, %arg3: memref<8x1024xf32, #tpu.memory_space<vmem>>, %arg4: memref<8x1024xf32, #tpu.memory_space<vmem>>, %arg5: memref<8x128xf32, #tpu.memory_space<vmem>>) attributes {dimension_semantics = [#tpu.dimension_semantics<parallel>, #tpu.dimension_semantics<parallel>], iteration_bounds = array<i64: 1, 1>, scalar_prefetch = 0 : i64, scratch_operands = 0 : i64, tpu.core_type = #tpu.core_type<tc>, window_params = [{transform_indices = @transform_0, window_bounds = array<i64: 2, 8, 1024>}, {transform_indices = @transform_1, window_bounds = array<i64: 8, 1024>}, {transform_indices = @transform_2, window_bounds = array<i64: 8, 1024>}, {transform_indices = @transform_3, window_bounds = array<i64: 8, 128>}]} {
    %c0 = arith.constant 0 : index
    %c0_0 = arith.constant 0 : index
    %0 = vector.load %arg3[%c0, %c0_0] : memref<8x1024xf32, #tpu.memory_space<vmem>>, vector<8x1024xf32>
    %c0_1 = arith.constant 0 : index
    %c0_2 = arith.constant 0 : index
    %c0_3 = arith.constant 0 : index
    %1 = vector.load %arg2[%c0_1, %c0_2, %c0_3] : memref<2x8x1024xf32, #tpu.memory_space<vmem>>, vector<1x8x1024xf32>
    %2 = vector.shape_cast %1 : vector<1x8x1024xf32> to vector<8x1024xf32>
    %3 = arith.subf %0, %2 : vector<8x1024xf32>
    %4 = arith.mulf %3, %3 : vector<8x1024xf32>
    %5 = vector.shape_cast %4 : vector<8x1024xf32> to vector<1x8x1024xf32>
    %cst = arith.constant dense<0.000000e+00> : vector<8x1024xf32>
    %6 = vector.multi_reduction <add>, %5, %cst [0] : vector<1x8x1024xf32> to vector<8x1024xf32>
    %c0_4 = arith.constant 0 : index
    %c0_5 = arith.constant 0 : index
    %7 = vector.load %arg4[%c0_4, %c0_5] : memref<8x1024xf32, #tpu.memory_space<vmem>>, vector<8x1024xf32>
    %c1 = arith.constant 1 : index
    %c0_6 = arith.constant 0 : index
    %c0_7 = arith.constant 0 : index
    %8 = vector.load %arg2[%c1, %c0_6, %c0_7] : memref<2x8x1024xf32, #tpu.memory_space<vmem>>, vector<1x8x1024xf32>
    %9 = vector.shape_cast %8 : vector<1x8x1024xf32> to vector<8x1024xf32>
    %10 = arith.subf %7, %9 : vector<8x1024xf32>
    %11 = arith.mulf %10, %10 : vector<8x1024xf32>
    %12 = vector.shape_cast %11 : vector<8x1024xf32> to vector<1x8x1024xf32>
    %cst_8 = arith.constant dense<0.000000e+00> : vector<8x1024xf32>
    %13 = vector.multi_reduction <add>, %12, %cst_8 [0] : vector<1x8x1024xf32> to vector<8x1024xf32>
    %14 = arith.addf %6, %13 : vector<8x1024xf32>
    %15 = vector.extract_strided_slice %14 {offsets = [0, 0], sizes = [8, 128], strides = [1, 1]} : vector<8x1024xf32> to vector<8x128xf32>
    %16 = vector.extract_strided_slice %14 {offsets = [0, 128], sizes = [8, 128], strides = [1, 1]} : vector<8x1024xf32> to vector<8x128xf32>
    %17 = vector.extract_strided_slice %14 {offsets = [0, 256], sizes = [8, 128], strides = [1, 1]} : vector<8x1024xf32> to vector<8x128xf32>
    %18 = vector.extract_strided_slice %14 {offsets = [0, 384], sizes = [8, 128], strides = [1, 1]} : vector<8x1024xf32> to vector<8x128xf32>
    %19 = vector.extract_strided_slice %14 {offsets = [0, 512], sizes = [8, 128], strides = [1, 1]} : vector<8x1024xf32> to vector<8x128xf32>
    %20 = arith.addf %15, %19 : vector<8x128xf32>
    %21 = vector.extract_strided_slice %14 {offsets = [0, 640], sizes = [8, 128], strides = [1, 1]} : vector<8x1024xf32> to vector<8x128xf32>
    %22 = arith.addf %16, %21 : vector<8x128xf32>
    %23 = vector.extract_strided_slice %14 {offsets = [0, 768], sizes = [8, 128], strides = [1, 1]} : vector<8x1024xf32> to vector<8x128xf32>
    %24 = arith.addf %17, %23 : vector<8x128xf32>
    %25 = vector.extract_strided_slice %14 {offsets = [0, 896], sizes = [8, 128], strides = [1, 1]} : vector<8x1024xf32> to vector<8x128xf32>
    %26 = arith.addf %18, %25 : vector<8x128xf32>
    %27 = arith.addf %20, %22 : vector<8x128xf32>
    %28 = arith.addf %27, %24 : vector<8x128xf32>
    %29 = arith.addf %28, %26 : vector<8x128xf32>
    %c0_9 = arith.constant 0 : index
    %c0_10 = arith.constant 0 : index
    %30 = vector.load %arg5[%c0_9, %c0_10] : memref<8x128xf32, #tpu.memory_space<vmem>>, vector<8x128xf32>
    tpu.vector_store %arg5[%c0_9, %c0_10], %29 {strides = array<i32>} : memref<8x128xf32, #tpu.memory_space<vmem>>, vector<8x128xf32>,
    return
  }
  func.func @transform_0(%arg0: i32, %arg1: i32) -> (i32, i32, i32) {
    %c0_i32 = arith.constant 0 : i32
    %c0_i32_0 = arith.constant 0 : i32
    return %c0_i32, %arg0, %arg1 : i32, i32, i32
  }
  func.func @transform_1(%arg0: i32, %arg1: i32) -> (i32, i32) {
    %c0_i32 = arith.constant 0 : i32
    return %arg0, %arg1 : i32, i32
  }
  func.func @transform_2(%arg0: i32, %arg1: i32) -> (i32, i32) {
    %c1_i32 = arith.constant 1 : i32
    %0 = arith.addi %arg1, %c1_i32 : i32
    %c0_i32 = arith.constant 0 : i32
    return %arg0, %0 : i32, i32
  }
  func.func @transform_3(%arg0: i32, %arg1: i32) -> (i32, i32) {
    %c0_i32 = arith.constant 0 : i32
    return %arg0, %arg1 : i32, i32
  }
}

</mosaic_0001>

<llo_original>
// kernel: tpu_custom_call.1
$region0: #{tpu_custom_call.1}
  #allocation0 [shape = 'u32[]', space=smem, size = 0x4, offset = 0x4, fixed_abs, tag = 'smem constant byte address 0x4 - core index']
  #allocation1 [shape = 'u32[144,128]{1,0:T(1,128)}', space=vmem, size = 0x12000, scoped, tag = 'internal scratch']
  %s0 = inlined_call_operand.hbm [shape: f32[2,8,1024], index: 0, kind: input, shape index: {}]
  %s1 = inlined_call_operand.hbm [shape: f32[8,2048], index: 1, kind: input, shape index: {}]
  %s2 = inlined_call_operand.hbm [shape: f32[8,2048], index: 2, kind: input, shape index: {}]
  %s3 = inlined_call_operand.hbm [shape: f32[8,128], index: 3, kind: output, shape index: {}]
  %s4 = sld [smem:[#allocation0]]
  $region34: #{tpu_custom_call.1} parent=0
    _
  %s6 = ssub.s32 1, %s4
  %s7 = scalar_select 0, %s6, %s4
  $region1: #{tpu_custom_call.1} parent=0
    #allocation2 [shape = 'u8[65536]{0}', space=vmem, size = 0x10000, scoped, tag = 'input window, operand 0, single buffered']
    #allocation3 [shape = 's32[1]{0}', space=sflag, size = 0x4, scoped, tag = 'scoped memory for tpu_custom_call.1']
    #allocation4 [shape = 's32[1]{0}', space=sflag, size = 0x4, scoped, tag = 'scoped memory for tpu_custom_call.1']
    #allocation5 [shape = 'u8[32768]{0}', space=vmem, size = 0x8000, scoped, tag = 'input window, operand 1, single buffered']
    #allocation6 [shape = 's32[1]{0}', space=sflag, size = 0x4, scoped, tag = 'scoped memory for tpu_custom_call.1']
    #allocation7 [shape = 'u8[32768]{0}', space=vmem, size = 0x8000, scoped, tag = 'input window, operand 2, single buffered']
    #allocation8 [shape = 'u8[4096]{0}', space=vmem, size = 0x1000, scoped, tag = 'output window, operand 0, single buffered']
    %8 = vsyncpa [#allocation3], 0
    %9 = vsyncpa [#allocation6], 0
    %10 = vsyncpa [#allocation4], 0
    // Predicated region
    $region2: #{tpu_custom_call.1} parent=1 // pred_check
      _
    $region3: #{tpu_custom_call.1} parent=1 // pred_check_branch
      %12 = sbr.rel (0) target = $region5
    $region4: #{tpu_custom_call.1} parent=1 // pred_region
      %s14 = ssub.s32 2048, 2048
      %15 = vsyncadd [#allocation3], %s14
      %s16 = sshll.u32 [#allocation2], 4
      %s17 = int_to_ptr.vmem [resolvable:$true] %s16
      %22 = dma.hbm_to_vmem [thread:$0]  %s0, 2048, %s17, [#allocation3], 1024, 1024, 64
    $region5: #{tpu_custom_call.1} parent=1 // pred_fallthru
      _
    // Predicated region
    $region6: #{tpu_custom_call.1} parent=1 // pred_check
      _
    $region7: #{tpu_custom_call.1} parent=1 // pred_check_branch
      %24 = sbr.rel (0) target = $region9
    $region8: #{tpu_custom_call.1} parent=1 // pred_region
      %s26 = ssub.s32 1024, 1024
      %27 = vsyncadd [#allocation6], %s26
      %s29 = sshll.u32 [#allocation5], 4
      %s30 = int_to_ptr.vmem [resolvable:$true] %s29
      %32 = dma.hbm_to_vmem [thread:$0]  %s1, 1024, %s30, [#allocation6]
    $region9: #{tpu_custom_call.1} parent=1 // pred_fallthru
      _
    // Predicated region
    $region10: #{tpu_custom_call.1} parent=1 // pred_check
      _
    $region11: #{tpu_custom_call.1} parent=1 // pred_check_branch
      %34 = sbr.rel (0) target = $region13
    $region12: #{tpu_custom_call.1} parent=1 // pred_region
      %s35 = sadd.s32 0, 1
      %s36 = smul.u32 8, %s35
      %s38 = ssub.s32 1024, 1024
      %39 = vsyncadd [#allocation6], %s38
      %s40 = smul.addr %s36, 128
      %s41 = scalar_lea.hbm %s2, %s40
      %s43 = sshll.u32 [#allocation7], 4
      %s44 = int_to_ptr.vmem [resolvable:$true] %s43
      %46 = dma.hbm_to_vmem [thread:$0]  %s41, 1024, %s44, [#allocation6]
    $region13: #{tpu_custom_call.1} parent=1 // pred_fallthru
      _
    // Predicated region
    $region14: #{tpu_custom_call.1} parent=1 // pred_check
      _
    $region15: #{tpu_custom_call.1} parent=1 // pred_check_branch
      %48 = sbr.rel (0) target = $region17
    $region16: #{tpu_custom_call.1} parent=1 // pred_region
      %49 = dma.done [#allocation3], 2048
    $region17: #{tpu_custom_call.1} parent=1 // pred_fallthru
      _
    // Predicated region
    $region18: #{tpu_custom_call.1} parent=1 // pred_check
      _
    $region19: #{tpu_custom_call.1} parent=1 // pred_check_branch
      %51 = sbr.rel (0) target = $region21
    $region20: #{tpu_custom_call.1} parent=1 // pred_region
      %52 = dma.done [#allocation6], 1024
    $region21: #{tpu_custom_call.1} parent=1 // pred_fallthru
      _
    // Predicated region
    $region22: #{tpu_custom_call.1} parent=1 // pred_check
      _
    $region23: #{tpu_custom_call.1} parent=1 // pred_check_branch
      %54 = sbr.rel (0) target = $region25
    $region24: #{tpu_custom_call.1} parent=1 // pred_region
      %55 = dma.done [#allocation6], 1024
    $region25: #{tpu_custom_call.1} parent=1 // pred_fallthru
      _
    %s56 = sadd.s32 0, 1
    %s57 = smul.u32 8, %s56
    %v58 = vld [vmem:[#allocation5] sm:$0xff]
    %v59 = vld [vmem:[#allocation5 + $0x8] sm:$0xff]
    %v60 = vld [vmem:[#allocation5 + $0x10] sm:$0xff]
    %v61 = vld [vmem:[#allocation5 + $0x18] sm:$0xff]
    %v62 = vld [vmem:[#allocation5 + $0x20] sm:$0xff]
    %v63 = vld [vmem:[#allocation5 + $0x28] sm:$0xff]
    %v64 = vld [vmem:[#allocation5 + $0x30] sm:$0xff]
    %v65 = vld [vmem:[#allocation5 + $0x38] sm:$0xff]
    %v66 = vld [vmem:[#allocation2] sm:$0xff]
    %v67 = vld [vmem:[#allocation2 + $0x8] sm:$0xff]
    %v68 = vld [vmem:[#allocation2 + $0x10] sm:$0xff]
    %v69 = vld [vmem:[#allocation2 + $0x18] sm:$0xff]
    %v70 = vld [vmem:[#allocation2 + $0x20] sm:$0xff]
    %v71 = vld [vmem:[#allocation2 + $0x28] sm:$0xff]
    %v72 = vld [vmem:[#allocation2 + $0x30] sm:$0xff]
    %v73 = vld [vmem:[#allocation2 + $0x38] sm:$0xff]
    %v74 = vsub.f32 %v58, %v66
    %v75 = vsub.f32 %v59, %v67
    %v76 = vsub.f32 %v60, %v68
    %v77 = vsub.f32 %v61, %v69
    %v78 = vsub.f32 %v62, %v70
    %v79 = vsub.f32 %v63, %v71
    %v80 = vsub.f32 %v64, %v72
    %v81 = vsub.f32 %v65, %v73
    %v82 = vmul.f32 %v74, %v74
    %v83 = vmul.f32 %v75, %v75
    %v84 = vmul.f32 %v76, %v76
    %v85 = vmul.f32 %v77, %v77
    %v86 = vmul.f32 %v78, %v78
    %v87 = vmul.f32 %v79, %v79
    %v88 = vmul.f32 %v80, %v80
    %v89 = vmul.f32 %v81, %v81
    %v90 = vadd.f32 %v82, 0.0
    %v91 = vadd.f32 %v83, 0.0
    %v92 = vadd.f32 %v84, 0.0
    %v93 = vadd.f32 %v85, 0.0
    %v94 = vadd.f32 %v86, 0.0
    %v95 = vadd.f32 %v87, 0.0
    %v96 = vadd.f32 %v88, 0.0
    %v97 = vadd.f32 %v89, 0.0
    %v98 = vld [vmem:[#allocation7] sm:$0xff]
    %v99 = vld [vmem:[#allocation7 + $0x8] sm:$0xff]
    %v100 = vld [vmem:[#allocation7 + $0x10] sm:$0xff]
    %v101 = vld [vmem:[#allocation7 + $0x18] sm:$0xff]
    %v102 = vld [vmem:[#allocation7 + $0x20] sm:$0xff]
    %v103 = vld [vmem:[#allocation7 + $0x28] sm:$0xff]
    %v104 = vld [vmem:[#allocation7 + $0x30] sm:$0xff]
    %v105 = vld [vmem:[#allocation7 + $0x38] sm:$0xff]
    %s106 = scalar_lea.vmem [#allocation2], 64
    %v107 = vld [vmem:[%s106] sm:$0xff]
    %v108 = vld [vmem:[%s106 + $0x8] sm:$0xff]
    %v109 = vld [vmem:[%s106 + $0x10] sm:$0xff]
    %v110 = vld [vmem:[%s106 + $0x18] sm:$0xff]
    %v111 = vld [vmem:[%s106 + $0x20] sm:$0xff]
    %v112 = vld [vmem:[%s106 + $0x28] sm:$0xff]
    %v113 = vld [vmem:[%s106 + $0x30] sm:$0xff]
    %v114 = vld [vmem:[%s106 + $0x38] sm:$0xff]
    %v115 = vsub.f32 %v98, %v107
    %v116 = vsub.f32 %v99, %v108
    %v117 = vsub.f32 %v100, %v109
    %v118 = vsub.f32 %v101, %v110
    %v119 = vsub.f32 %v102, %v111
    %v120 = vsub.f32 %v103, %v112
    %v121 = vsub.f32 %v104, %v113
    %v122 = vsub.f32 %v105, %v114
    %v123 = vmul.f32 %v115, %v115
    %v124 = vmul.f32 %v116, %v116
    %v125 = vmul.f32 %v117, %v117
    %v126 = vmul.f32 %v118, %v118
    %v127 = vmul.f32 %v119, %v119
    %v128 = vmul.f32 %v120, %v120
    %v129 = vmul.f32 %v121, %v121
    %v130 = vmul.f32 %v122, %v122
    %v131 = vadd.f32 %v123, 0.0
    %v132 = vadd.f32 %v124, 0.0
    %v133 = vadd.f32 %v125, 0.0
    %v134 = vadd.f32 %v126, 0.0
    %v135 = vadd.f32 %v127, 0.0
    %v136 = vadd.f32 %v128, 0.0
    %v137 = vadd.f32 %v129, 0.0
    %v138 = vadd.f32 %v130, 0.0
    %v139 = vadd.f32 %v90, %v131
    %v140 = vadd.f32 %v91, %v132
    %v141 = vadd.f32 %v92, %v133
    %v142 = vadd.f32 %v93, %v134
    %v143 = vadd.f32 %v94, %v135
    %v144 = vadd.f32 %v95, %v136
    %v145 = vadd.f32 %v96, %v137
    %v146 = vadd.f32 %v97, %v138
    %v147 = vadd.f32 %v139, %v143
    %v148 = vadd.f32 %v140, %v144
    %v149 = vadd.f32 %v141, %v145
    %v150 = vadd.f32 %v142, %v146
    %v151 = vadd.f32 %v147, %v148
    %v152 = vadd.f32 %v151, %v149
    %v153 = vadd.f32 %v152, %v150
    %154 = vst [vmem:[#allocation8] sm:$0xff] %v153
    // Predicated region
    $region26: #{tpu_custom_call.1} parent=1 // pred_check
      _
    $region27: #{tpu_custom_call.1} parent=1 // pred_check_branch
      %156 = sbr.rel (0) target = $region29
    $region28: #{tpu_custom_call.1} parent=1 // pred_region
      %s158 = ssub.s32 128, 128
      %159 = vsyncadd [#allocation4], %s158
      %s161 = sshll.u32 [#allocation8], 4
      %s162 = int_to_ptr.vmem [resolvable:$true] %s161
      %164 = dma.vmem_to_hbm [thread:$0]  %s162, 128, %s3, [#allocation4]
    $region29: #{tpu_custom_call.1} parent=1 // pred_fallthru
      _
    // Predicated region
    $region30: #{tpu_custom_call.1} parent=1 // pred_check
      _
    $region31: #{tpu_custom_call.1} parent=1 // pred_check_branch
      %166 = sbr.rel (0) target = $region33
    $region32: #{tpu_custom_call.1} parent=1 // pred_region
      %167 = dma.done [#allocation4], 128
    $region33: #{tpu_custom_call.1} parent=1 // pred_fallthru
      _
    %168 = vsyncpa [#allocation3], 1
    %169 = vsyncpa [#allocation6], 1
    %170 = vsyncpa [#allocation4], 1

</llo_original>
